<compile_context>
chip_gen: v6e
topology: v6e:2x2x1
jax: 0.10.0
libtpu: 0.0.40
codegen_flags: <defaults>
</compile_context>

<pallas_src>
import functools

import jax
import jax.numpy as jnp
from jax.experimental import pallas as pl
from jax.experimental.pallas import tpu as pltpu


def _pick_l2_tile(l2, target=512):
    """Largest divisor of l2 that is <= target and a multiple of 8 (else full l2)."""
    if l2 <= target:
        return l2
    for t in range(target, 7, -1):
        if l2 % t == 0 and t % 8 == 0:
            return t
    return l2


def _biaffine_kernel(x2_ref, x1t_ref, wmain_ref, wb2_ref, wb1_ref, wb12_ref,
                     o_ref, *, out_features, in1):
    # x2_ref   : (1, TL2, in2)   bf16  current (batch, L2-tile) of input2
    # x1t_ref  : (1, in1, L1)    bf16  input1^T for this batch (resident over tiles)
    # wmain_ref: (in2, O*in1)    bf16  main weight, fused over all O channels
    # wb2_ref  : (1, O*in1)      f32   bias[1] row   (zeros if bias[1] is False)
    # wb1_ref  : (in2, O)        bf16  bias[0] col   (zeros if bias[0] is False)
    # wb12_ref : (1, O)          f32   bias[0]&bias[1] constant
    # o_ref    : (1, O, TL2, L1) f32
    x2 = x2_ref[0]                       # (TL2, in2)
    x1t = x1t_ref[0]                     # (in1, L1)

    # First matmul, fused over all O channels: (TL2, in2) @ (in2, O*in1).
    left = jnp.dot(x2, wmain_ref[...], preferred_element_type=jnp.float32)
    left = left + wb2_ref[...]           # bias[1] (ones col of input2), f32 add

    # bias[0] (ones col of input1): per-(row, o) scalar, broadcast over L1.
    cvec = jnp.dot(x2, wb1_ref[...], preferred_element_type=jnp.float32)
    cvec = cvec + wb12_ref[...]          # (TL2, O)

    # Second matmul per output channel (O is small & static -> unrolled).
    # TODO(synk): for very large L1, add an inner L1-tile loop over x1t here so
    # `left` is still computed only once per (b, L2-tile).
    for o in range(out_features):
        left_o = left[:, o * in1:(o + 1) * in1].astype(x1t.dtype)       # (TL2, in1)
        res = jnp.dot(left_o, x1t, preferred_element_type=jnp.float32)  # (TL2, L1)
        res = res + cvec[:, o:o + 1]     # bias[0] term on the f32 accumulator
        o_ref[0, o, :, :] = res.astype(o_ref.dtype)


def biaffine_pallas(input1, input2, weight, *, out_features, bias=(True, True),
                    compute_dtype=jnp.bfloat16):
    """Biaffine forward.
    input1 (B,L1,in1), input2 (B,L2,in2), weight (O*(in2+bias[1]), in1+bias[0]).
    Returns (B, L2, L1, O) float32 (PyTorch layout)."""
    B, L1, in1 = input1.shape
    _, L2, in2 = input2.shape
    O = out_features
    b0, b1 = bool(bias[0]), bool(bias[1])
    d1 = in1 + int(b0)
    d2 = in2 + int(b1)
    assert weight.shape == (O * d2, d1), weight.shape

    w_r = weight.reshape(O, d2, d1).astype(jnp.float32)

    # Main (in2 x in1) block of every W_o, fused over o along the N dimension.
    w_main = jnp.transpose(w_r[:, :in2, :in1], (1, 0, 2)).reshape(in2, O * in1)
    w_main = w_main.astype(compute_dtype)
    # bias[1]: ones column appended to input2 -> row of W_o, added to `left` (f32).
    if b1:
        wb2 = w_r[:, in2, :in1].reshape(1, O * in1)
    else:
        wb2 = jnp.zeros((1, O * in1), jnp.float32)
    # bias[0]: ones column appended to input1 -> column of W_o, matvec'd with x2.
    if b0:
        wb1 = jnp.transpose(w_r[:, :in2, in1], (1, 0)).astype(compute_dtype)   # (in2, O)
    else:
        wb1 = jnp.zeros((in2, O), compute_dtype)
    if b0 and b1:
        wb12 = w_r[:, in2, in1].reshape(1, O)
    else:
        wb12 = jnp.zeros((1, O), jnp.float32)

    x2c = input2.astype(compute_dtype)                              # (B, L2, in2)
    x1t = jnp.transpose(input1, (0, 2, 1)).astype(compute_dtype)    # (B, in1, L1)

    TL2 = _pick_l2_tile(L2)
    grid = (B, L2 // TL2)

    kernel = functools.partial(_biaffine_kernel, out_features=O, in1=in1)

    grid_spec = pltpu.PrefetchScalarGridSpec(
        num_scalar_prefetch=0,
        grid=grid,
        in_specs=[
            pl.BlockSpec((1, TL2, in2), lambda b, t: (b, t, 0)),    # x2 tile
            pl.BlockSpec((1, in1, L1), lambda b, t: (b, 0, 0)),     # x1^T (resident over t)
            pl.BlockSpec((in2, O * in1), lambda b, t: (0, 0)),      # W main (resident)
            pl.BlockSpec((1, O * in1), lambda b, t: (0, 0)),        # bias[1] row
            pl.BlockSpec((in2, O), lambda b, t: (0, 0)),            # bias[0] col
            pl.BlockSpec((1, O), lambda b, t: (0, 0)),              # bias[0]&[1] const
        ],
        out_specs=pl.BlockSpec((1, O, TL2, L1), lambda b, t: (b, 0, t, 0)),
    )

    out = pl.pallas_call(
        kernel,
        # f32 output: matches the f32 module inputs and preserves the f32 bias adds.
        out_shape=jax.ShapeDtypeStruct((B, O, L2, L1), jnp.float32),
        grid_spec=grid_spec,
        compiler_params=pltpu.CompilerParams(
            dimension_semantics=("parallel", "parallel"),
            vmem_limit_bytes=48 * 1024 * 1024),
    )(x2c, x1t, w_main, wb2, wb1, wb12)

    # (B, O, L2, L1) -> PyTorch layout (B, L2, L1, O).  Consumers that accept
    # (B, O, L2, L1) can skip this extra HBM round-trip.
    return jnp.transpose(out, (0, 2, 3, 1))


# ----------------------------------------------------------------------------
# Pure-JAX reference (literal f32 transcription of the torch forward).
# ----------------------------------------------------------------------------
def biaffine_ref(input1, input2, weight, *, out_features, bias=(True, True)):
    B, L1, _ = input1.shape
    _, L2, _ = input2.shape
    if bias[0]:
        input1 = jnp.concatenate(
            [input1, jnp.ones((B, L1, 1), input1.dtype)], axis=2)
    if bias[1]:
        input2 = jnp.concatenate(
            [input2, jnp.ones((B, L2, 1), input2.dtype)], axis=2)
    d2 = input2.shape[2]
    affine = jnp.einsum('bim,nm->bin', input1, weight)          # (B, L1, O*d2)
    affine = affine.reshape(B, L1 * out_features, d2)
    bia = jnp.einsum('bpk,bjk->bpj', affine, input2)            # (B, L1*O, L2)
    bia = jnp.transpose(bia, (0, 2, 1)).reshape(B, L2, L1, out_features)
    return bia


if __name__ == "__main__":
    B, L1, L2 = 2, 8, 6
    IN1, IN2, OUT = 16, 12, 4
    BIAS = (True, True)
    d1 = IN1 + int(BIAS[0])
    d2 = IN2 + int(BIAS[1])

    key = jax.random.PRNGKey(0)
    k1, k2, kw = jax.random.split(key, 3)
    x1 = jax.random.normal(k1, (B, L1, IN1), jnp.float32)
    x2 = jax.random.normal(k2, (B, L2, IN2), jnp.float32)
    # NOTE: reset_parameters() zero-initializes the linear weight (output would
    # be trivially all-zero); use random weights of the exact same shape so the
    # numerical check is meaningful.
    W = 0.1 * jax.random.normal(kw, (OUT * d2, d1), jnp.float32)

    out_pl = biaffine_pallas(x1, x2, W, out_features=OUT, bias=BIAS)
    jax.block_until_ready(out_pl)

    out_rf = biaffine_ref(x1, x2, W, out_features=OUT, bias=BIAS)
    jax.block_until_ready(out_rf)

    assert out_pl.shape == (B, L2, L1, OUT), out_pl.shape
    # bf16 MXU operands with f32 accumulation -> looser tolerance than pure f32.
    max_err = float(jnp.max(jnp.abs(out_pl - out_rf)))
    assert jnp.allclose(out_pl, out_rf, rtol=5e-2, atol=5e-2), max_err

    print("KERNEL_OK")
</pallas_src>

<mosaic_0001>
module attributes {stable_mosaic.version = 11 : i64} {
  func.func @_biaffine_kernel(%arg0: i32, %arg1: i32, %arg2: memref<1x6x12xbf16, #tpu.memory_space<vmem>>, %arg3: memref<1x16x8xbf16, #tpu.memory_space<vmem>>, %arg4: memref<12x64xbf16, #tpu.memory_space<vmem>>, %arg5: memref<1x64xf32, #tpu.memory_space<vmem>>, %arg6: memref<12x4xbf16, #tpu.memory_space<vmem>>, %arg7: memref<1x4xf32, #tpu.memory_space<vmem>>, %arg8: memref<1x4x6x8xf32, #tpu.memory_space<vmem>>) attributes {dimension_semantics = [#tpu.dimension_semantics<parallel>, #tpu.dimension_semantics<parallel>], iteration_bounds = array<i64: 2, 1>, scalar_prefetch = 0 : i64, scratch_operands = 0 : i64, tpu.core_type = #tpu.core_type<tc>, window_params = [{transform_indices = @transform_0, window_bounds = array<i64: 1, 6, 12>}, {transform_indices = @transform_1, window_bounds = array<i64: 1, 16, 8>}, {pipeline_mode = #tpu.pipeline_mode<synchronous>, transform_indices = @transform_2, window_bounds = array<i64: 12, 64>}, {pipeline_mode = #tpu.pipeline_mode<synchronous>, transform_indices = @transform_3, window_bounds = array<i64: 1, 64>}, {pipeline_mode = #tpu.pipeline_mode<synchronous>, transform_indices = @transform_4, window_bounds = array<i64: 12, 4>}, {pipeline_mode = #tpu.pipeline_mode<synchronous>, transform_indices = @transform_5, window_bounds = array<i64: 1, 4>}, {transform_indices = @transform_6, window_bounds = array<i64: 1, 4, 6, 8>}]} {
    %c0 = arith.constant 0 : index
    %c0_0 = arith.constant 0 : index
    %c0_1 = arith.constant 0 : index
    %0 = vector.load %arg2[%c0, %c0_0, %c0_1] : memref<1x6x12xbf16, #tpu.memory_space<vmem>>, vector<1x6x12xbf16>
    %1 = vector.shape_cast %0 : vector<1x6x12xbf16> to vector<6x12xbf16>
    %c0_2 = arith.constant 0 : index
    %c0_3 = arith.constant 0 : index
    %c0_4 = arith.constant 0 : index
    %2 = vector.load %arg3[%c0_2, %c0_3, %c0_4] : memref<1x16x8xbf16, #tpu.memory_space<vmem>>, vector<1x16x8xbf16>
    %3 = vector.shape_cast %2 : vector<1x16x8xbf16> to vector<16x8xbf16>
    %c0_5 = arith.constant 0 : index
    %c0_6 = arith.constant 0 : index
    %4 = vector.load %arg4[%c0_5, %c0_6] : memref<12x64xbf16, #tpu.memory_space<vmem>>, vector<12x64xbf16>
    %cst = arith.constant dense<0.000000e+00> : vector<6x64xf32>
    %5 = tpu.matmul %1, %4, %cst {dimension_numbers = #tpu.dot_dimension_numbers<[1], [0], [0], [1], [0, 0, 1, 1], [], []>} : vector<6x12xbf16>, vector<12x64xbf16>, vector<6x64xf32> -> vector<6x64xf32>
    %c0_7 = arith.constant 0 : index
    %c0_8 = arith.constant 0 : index
    %6 = vector.load %arg5[%c0_7, %c0_8] : memref<1x64xf32, #tpu.memory_space<vmem>>, vector<1x64xf32>
    %7 = vector.broadcast %6 : vector<1x64xf32> to vector<6x64xf32>
    %8 = arith.addf %5, %7 : vector<6x64xf32>
    %c0_9 = arith.constant 0 : index
    %c0_10 = arith.constant 0 : index
    %9 = vector.load %arg6[%c0_9, %c0_10] : memref<12x4xbf16, #tpu.memory_space<vmem>>, vector<12x4xbf16>
    %cst_11 = arith.constant dense<0.000000e+00> : vector<6x4xf32>
    %10 = tpu.matmul %1, %9, %cst_11 {dimension_numbers = #tpu.dot_dimension_numbers<[1], [0], [0], [1], [0, 0, 1, 1], [], []>} : vector<6x12xbf16>, vector<12x4xbf16>, vector<6x4xf32> -> vector<6x4xf32>
    %c0_12 = arith.constant 0 : index
    %c0_13 = arith.constant 0 : index
    %11 = vector.load %arg7[%c0_12, %c0_13] : memref<1x4xf32, #tpu.memory_space<vmem>>, vector<1x4xf32>
    %12 = vector.broadcast %11 : vector<1x4xf32> to vector<6x4xf32>
    %13 = arith.addf %10, %12 : vector<6x4xf32>
    %14 = vector.extract_strided_slice %8 {offsets = [0, 0], sizes = [6, 16], strides = [1, 1]} : vector<6x64xf32> to vector<6x16xf32>
    %15 = arith.truncf %14 : vector<6x16xf32> to vector<6x16xbf16>
    %cst_14 = arith.constant dense<0.000000e+00> : vector<6x8xf32>
    %16 = tpu.matmul %15, %3, %cst_14 {dimension_numbers = #tpu.dot_dimension_numbers<[1], [0], [0], [1], [0, 0, 1, 1], [], []>} : vector<6x16xbf16>, vector<16x8xbf16>, vector<6x8xf32> -> vector<6x8xf32>
    %17 = vector.extract_strided_slice %13 {offsets = [0, 0], sizes = [6, 1], strides = [1, 1]} : vector<6x4xf32> to vector<6x1xf32>
    %18 = vector.broadcast %17 : vector<6x1xf32> to vector<6x8xf32>
    %19 = arith.addf %16, %18 : vector<6x8xf32>
    %c0_15 = arith.constant 0 : index
    %c0_16 = arith.constant 0 : index
    %c0_17 = arith.constant 0 : index
    %c0_18 = arith.constant 0 : index
    %20 = vector.load %arg8[%c0_15, %c0_16, %c0_17, %c0_18] : memref<1x4x6x8xf32, #tpu.memory_space<vmem>>, vector<1x1x6x8xf32>
    %21 = vector.shape_cast %20 : vector<1x1x6x8xf32> to vector<6x8xf32>
    %22 = vector.shape_cast %19 : vector<6x8xf32> to vector<1x1x6x8xf32>
    tpu.vector_store %arg8[%c0_15, %c0_16, %c0_17, %c0_18], %22 {strides = array<i32>} : memref<1x4x6x8xf32, #tpu.memory_space<vmem>>, vector<1x1x6x8xf32>,
    %23 = vector.extract_strided_slice %8 {offsets = [0, 16], sizes = [6, 16], strides = [1, 1]} : vector<6x64xf32> to vector<6x16xf32>
    %24 = arith.truncf %23 : vector<6x16xf32> to vector<6x16xbf16>
    %cst_19 = arith.constant dense<0.000000e+00> : vector<6x8xf32>
    %25 = tpu.matmul %24, %3, %cst_19 {dimension_numbers = #tpu.dot_dimension_numbers<[1], [0], [0], [1], [0, 0, 1, 1], [], []>} : vector<6x16xbf16>, vector<16x8xbf16>, vector<6x8xf32> -> vector<6x8xf32>
    %26 = vector.extract_strided_slice %13 {offsets = [0, 1], sizes = [6, 1], strides = [1, 1]} : vector<6x4xf32> to vector<6x1xf32>
    %27 = vector.broadcast %26 : vector<6x1xf32> to vector<6x8xf32>
    %28 = arith.addf %25, %27 : vector<6x8xf32>
    %c0_20 = arith.constant 0 : index
    %c1 = arith.constant 1 : index
    %c0_21 = arith.constant 0 : index
    %c0_22 = arith.constant 0 : index
    %29 = vector.load %arg8[%c0_20, %c1, %c0_21, %c0_22] : memref<1x4x6x8xf32, #tpu.memory_space<vmem>>, vector<1x1x6x8xf32>
    %30 = vector.shape_cast %29 : vector<1x1x6x8xf32> to vector<6x8xf32>
    %31 = vector.shape_cast %28 : vector<6x8xf32> to vector<1x1x6x8xf32>
    tpu.vector_store %arg8[%c0_20, %c1, %c0_21, %c0_22], %31 {strides = array<i32>} : memref<1x4x6x8xf32, #tpu.memory_space<vmem>>, vector<1x1x6x8xf32>,
    %32 = vector.extract_strided_slice %8 {offsets = [0, 32], sizes = [6, 16], strides = [1, 1]} : vector<6x64xf32> to vector<6x16xf32>
    %33 = arith.truncf %32 : vector<6x16xf32> to vector<6x16xbf16>
    %cst_23 = arith.constant dense<0.000000e+00> : vector<6x8xf32>
    %34 = tpu.matmul %33, %3, %cst_23 {dimension_numbers = #tpu.dot_dimension_numbers<[1], [0], [0], [1], [0, 0, 1, 1], [], []>} : vector<6x16xbf16>, vector<16x8xbf16>, vector<6x8xf32> -> vector<6x8xf32>
    %35 = vector.extract_strided_slice %13 {offsets = [0, 2], sizes = [6, 1], strides = [1, 1]} : vector<6x4xf32> to vector<6x1xf32>
    %36 = vector.broadcast %35 : vector<6x1xf32> to vector<6x8xf32>
    %37 = arith.addf %34, %36 : vector<6x8xf32>
    %c0_24 = arith.constant 0 : index
    %c2 = arith.constant 2 : index
    %c0_25 = arith.constant 0 : index
    %c0_26 = arith.constant 0 : index
    %38 = vector.load %arg8[%c0_24, %c2, %c0_25, %c0_26] : memref<1x4x6x8xf32, #tpu.memory_space<vmem>>, vector<1x1x6x8xf32>
    %39 = vector.shape_cast %38 : vector<1x1x6x8xf32> to vector<6x8xf32>
    %40 = vector.shape_cast %37 : vector<6x8xf32> to vector<1x1x6x8xf32>
    tpu.vector_store %arg8[%c0_24, %c2, %c0_25, %c0_26], %40 {strides = array<i32>} : memref<1x4x6x8xf32, #tpu.memory_space<vmem>>, vector<1x1x6x8xf32>,
    %41 = vector.extract_strided_slice %8 {offsets = [0, 48], sizes = [6, 16], strides = [1, 1]} : vector<6x64xf32> to vector<6x16xf32>
    %42 = arith.truncf %41 : vector<6x16xf32> to vector<6x16xbf16>
    %cst_27 = arith.constant dense<0.000000e+00> : vector<6x8xf32>
    %43 = tpu.matmul %42, %3, %cst_27 {dimension_numbers = #tpu.dot_dimension_numbers<[1], [0], [0], [1], [0, 0, 1, 1], [], []>} : vector<6x16xbf16>, vector<16x8xbf16>, vector<6x8xf32> -> vector<6x8xf32>
    %44 = vector.extract_strided_slice %13 {offsets = [0, 3], sizes = [6, 1], strides = [1, 1]} : vector<6x4xf32> to vector<6x1xf32>
    %45 = vector.broadcast %44 : vector<6x1xf32> to vector<6x8xf32>
    %46 = arith.addf %43, %45 : vector<6x8xf32>
    %c0_28 = arith.constant 0 : index
    %c3 = arith.constant 3 : index
    %c0_29 = arith.constant 0 : index
    %c0_30 = arith.constant 0 : index
    %47 = vector.load %arg8[%c0_28, %c3, %c0_29, %c0_30] : memref<1x4x6x8xf32, #tpu.memory_space<vmem>>, vector<1x1x6x8xf32>
    %48 = vector.shape_cast %47 : vector<1x1x6x8xf32> to vector<6x8xf32>
    %49 = vector.shape_cast %46 : vector<6x8xf32> to vector<1x1x6x8xf32>
    tpu.vector_store %arg8[%c0_28, %c3, %c0_29, %c0_30], %49 {strides = array<i32>} : memref<1x4x6x8xf32, #tpu.memory_space<vmem>>, vector<1x1x6x8xf32>,
    return
  }
  func.func @transform_0(%arg0: i32, %arg1: i32) -> (i32, i32, i32) {
    %c0_i32 = arith.constant 0 : i32
    %c0_i32_0 = arith.constant 0 : i32
    return %arg0, %arg1, %c0_i32 : i32, i32, i32
  }
  func.func @transform_1(%arg0: i32, %arg1: i32) -> (i32, i32, i32) {
    %c0_i32 = arith.constant 0 : i32
    %c0_i32_0 = arith.constant 0 : i32
    %c0_i32_1 = arith.constant 0 : i32
    return %arg0, %c0_i32, %c0_i32_0 : i32, i32, i32
  }
  func.func @transform_2(%arg0: i32, %arg1: i32) -> (i32, i32) {
    %c0_i32 = arith.constant 0 : i32
    %c0_i32_0 = arith.constant 0 : i32
    %c0_i32_1 = arith.constant 0 : i32
    return %c0_i32, %c0_i32_0 : i32, i32
  }
  func.func @transform_3(%arg0: i32, %arg1: i32) -> (i32, i32) {
    %c0_i32 = arith.constant 0 : i32
    %c0_i32_0 = arith.constant 0 : i32
    %c0_i32_1 = arith.constant 0 : i32
    return %c0_i32, %c0_i32_0 : i32, i32
  }
  func.func @transform_4(%arg0: i32, %arg1: i32) -> (i32, i32) {
    %c0_i32 = arith.constant 0 : i32
    %c0_i32_0 = arith.constant 0 : i32
    %c0_i32_1 = arith.constant 0 : i32
    return %c0_i32, %c0_i32_0 : i32, i32
  }
  func.func @transform_5(%arg0: i32, %arg1: i32) -> (i32, i32) {
    %c0_i32 = arith.constant 0 : i32
    %c0_i32_0 = arith.constant 0 : i32
    %c0_i32_1 = arith.constant 0 : i32
    return %c0_i32, %c0_i32_0 : i32, i32
  }
  func.func @transform_6(%arg0: i32, %arg1: i32) -> (i32, i32, i32, i32) {
    %c0_i32 = arith.constant 0 : i32
    %c0_i32_0 = arith.constant 0 : i32
    %c0_i32_1 = arith.constant 0 : i32
    return %arg0, %c0_i32, %arg1, %c0_i32_0 : i32, i32, i32, i32
  }
}

</mosaic_0001>

<llo_original>
// kernel: tpu_custom_call.1
$region0: #{tpu_custom_call.1}
  #allocation0 [shape = 'u32[]', space=smem, size = 0x4, offset = 0x4, fixed_abs, tag = 'smem constant byte address 0x4 - core index']
  #allocation1 [shape = 'u32[144,128]{1,0:T(1,128)}', space=vmem, size = 0x12000, scoped, tag = 'internal scratch']
  %s0 = inlined_call_operand.vmem [shape: bf16[2,6,12], index: 0, kind: input, shape index: {}]
  %s1 = inlined_call_operand.vmem [shape: bf16[2,16,8], index: 1, kind: input, shape index: {}]
  %s2 = inlined_call_operand.vmem [shape: bf16[12,64], index: 2, kind: input, shape index: {}]
  %s3 = inlined_call_operand.vmem [shape: f32[1,64], index: 3, kind: input, shape index: {}]
  %s4 = inlined_call_operand.vmem [shape: bf16[12,4], index: 4, kind: input, shape index: {}]
  %s5 = inlined_call_operand.vmem [shape: f32[1,4], index: 5, kind: input, shape index: {}]
  %s6 = inlined_call_operand.vmem [shape: f32[2,4,6,8], index: 6, kind: output, shape index: {}]
  %s7 = sld [smem:[#allocation0]]
  $region57: #{tpu_custom_call.1} parent=0
    _
  %s9 = ssub.s32 1, %s7
  %s10 = scalar_select 0, %s9, %s7
  loop: start=0, step=1, limit=4
  $region2: #{tpu_custom_call.1} parent=0 // loop_pre_header
    _
  $region3: #{tpu_custom_call.1} parent=0 // loop_header
    %s12 = sphi 0, %s16
    %p13 = scmp.ge.s32.totalorder %s12, 4
    %s19 = sphi 0, %s31
    %s20 = sphi 0, %s27
    %s21 = sphi 0, %s19
    %s22 = sphi 0, %s20
    %s23 = sphi 0, %s21
    %s24 = sphi 0, %s22
    %s36 = sphi 0, %s38
    %s39 = sphi 0, %s36
    %s40 = sphi 0, %s39
    %s56 = sphi 0, %s40
    %s62 = sphi 0, %s64
    %s65 = sphi 0, %s62
    %s66 = sphi 0, %s65
    %s82 = sphi 0, %s66
    %s86 = sphi 0, %s86
    %s88 = sphi 0, %s86
    %s89 = sphi 0, %s88
    %s103 = sphi 0, %s89
    %s107 = sphi 0, %s107
    %s109 = sphi 0, %s107
    %s110 = sphi 0, %s109
    %s124 = sphi 0, %s110
    %s128 = sphi 0, %s128
    %s130 = sphi 0, %s128
    %s131 = sphi 0, %s130
    %s145 = sphi 0, %s131
    %s149 = sphi 0, %s149
    %s151 = sphi 0, %s149
    %s152 = sphi 0, %s151
    %s166 = sphi 0, %s152
    %s174 = sphi 0, %s176
    %s177 = sphi 0, %s174
    %s178 = sphi 0, %s177
    %s194 = sphi 0, %s178
  $region4: #{tpu_custom_call.1} parent=0 // loop_header_branch
    %15 = sbr.rel (%p13) target = $region8
  $region5: #{tpu_custom_call.1} parent=0 // loop_body
    %s17 = ssub.s32 %s12, 1
    %s18 = ssub.s32 %s12, 2
    %s25 = sadd.s32 1, %s20
    %p26 = scmp.ge.s32.totalorder %s25, 1
    %s27 = scalar_select %p26, 0, %s25
    %s28 = sadd.s32 1, %s19
    %s29 = scalar_select %p26, %s28, %s19
    %p30 = scmp.ge.s32.totalorder %s29, 2
    %s31 = scalar_select %p30, 0, %s29
    %s32 = ssub.s32 %s19, %s31
    %s33 = ssub.s32 %s20, %s27
    %s34 = sor.u32 %s32, %s33
    %p35 = scmp.eq.s32.totalorder %s34, 0
    %s37 = sadd.s32 %s36, 1
    %s38 = scalar_select %p35, %s36, %s37
    %p41 = pneg %p35
    %p42 = scmp.eq.s32.totalorder %s12, 1
    %p43 = por %p41, %p42
    %p44 = scmp.ne.s32.totalorder %s36, %s39
    %p45 = scmp.eq.s32.totalorder %s12, 0
    %p46 = por %p44, %p45
    %p47 = scmp.ne.s32.totalorder %s36, %s39
    %p48 = scmp.eq.s32.totalorder %s17, 1
    %p49 = por %p47, %p48
    %p50 = scmp.ne.s32.totalorder %s39, %s40
    %p51 = scmp.eq.s32.totalorder %s17, 0
    %p52 = por %p50, %p51
    %p53 = scmp.ne.s32.totalorder %s39, %s40
    %p54 = scmp.eq.s32.totalorder %s18, 1
    %p55 = por %p53, %p54
    %p57 = scmp.ne.s32.totalorder %s40, %s56
    %p58 = scmp.eq.s32.totalorder %s18, 0
    %p59 = por %p57, %p58
    %s60 = ssub.s32 %s19, %s31
    %p61 = scmp.eq.s32.totalorder %s60, 0
    %s63 = sadd.s32 %s62, 1
    %s64 = scalar_select %p61, %s62, %s63
    %p67 = pneg %p61
    %p68 = scmp.eq.s32.totalorder %s12, 1
    %p69 = por %p67, %p68
    %p70 = scmp.ne.s32.totalorder %s62, %s65
    %p71 = scmp.eq.s32.totalorder %s12, 0
    %p72 = por %p70, %p71
    %p73 = scmp.ne.s32.totalorder %s62, %s65
    %p74 = scmp.eq.s32.totalorder %s17, 1
    %p75 = por %p73, %p74
    %p76 = scmp.ne.s32.totalorder %s65, %s66
    %p77 = scmp.eq.s32.totalorder %s17, 0
    %p78 = por %p76, %p77
    %p79 = scmp.ne.s32.totalorder %s65, %s66
    %p80 = scmp.eq.s32.totalorder %s18, 1
    %p81 = por %p79, %p80
    %p83 = scmp.ne.s32.totalorder %s66, %s82
    %p84 = scmp.eq.s32.totalorder %s18, 0
    %p85 = por %p83, %p84
    %s87 = sadd.s32 %s86, 1
    %p90 = scmp.eq.s32.totalorder %s12, 1
    %p91 = scmp.ne.s32.totalorder %s86, %s88
    %p92 = scmp.eq.s32.totalorder %s12, 0
    %p93 = por %p91, %p92
    %p94 = scmp.ne.s32.totalorder %s86, %s88
    %p95 = scmp.eq.s32.totalorder %s17, 1
    %p96 = por %p94, %p95
    %p97 = scmp.ne.s32.totalorder %s88, %s89
    %p98 = scmp.eq.s32.totalorder %s17, 0
    %p99 = por %p97, %p98
    %p100 = scmp.ne.s32.totalorder %s88, %s89
    %p101 = scmp.eq.s32.totalorder %s18, 1
    %p102 = por %p100, %p101
    %p104 = scmp.ne.s32.totalorder %s89, %s103
    %p105 = scmp.eq.s32.totalorder %s18, 0
    %p106 = por %p104, %p105
    %s108 = sadd.s32 %s107, 1
    %p111 = scmp.eq.s32.totalorder %s12, 1
    %p112 = scmp.ne.s32.totalorder %s107, %s109
    %p113 = scmp.eq.s32.totalorder %s12, 0
    %p114 = por %p112, %p113
    %p115 = scmp.ne.s32.totalorder %s107, %s109
    %p116 = scmp.eq.s32.totalorder %s17, 1
    %p117 = por %p115, %p116
    %p118 = scmp.ne.s32.totalorder %s109, %s110
    %p119 = scmp.eq.s32.totalorder %s17, 0
    %p120 = por %p118, %p119
    %p121 = scmp.ne.s32.totalorder %s109, %s110
    %p122 = scmp.eq.s32.totalorder %s18, 1
    %p123 = por %p121, %p122
    %p125 = scmp.ne.s32.totalorder %s110, %s124
    %p126 = scmp.eq.s32.totalorder %s18, 0
    %p127 = por %p125, %p126
    %s129 = sadd.s32 %s128, 1
    %p132 = scmp.eq.s32.totalorder %s12, 1
    %p133 = scmp.ne.s32.totalorder %s128, %s130
    %p134 = scmp.eq.s32.totalorder %s12, 0
    %p135 = por %p133, %p134
    %p136 = scmp.ne.s32.totalorder %s128, %s130
    %p137 = scmp.eq.s32.totalorder %s17, 1
    %p138 = por %p136, %p137
    %p139 = scmp.ne.s32.totalorder %s130, %s131
    %p140 = scmp.eq.s32.totalorder %s17, 0
    %p141 = por %p139, %p140
    %p142 = scmp.ne.s32.totalorder %s130, %s131
    %p143 = scmp.eq.s32.totalorder %s18, 1
    %p144 = por %p142, %p143
    %p146 = scmp.ne.s32.totalorder %s131, %s145
    %p147 = scmp.eq.s32.totalorder %s18, 0
    %p148 = por %p146, %p147
    %s150 = sadd.s32 %s149, 1
    %p153 = scmp.eq.s32.totalorder %s12, 1
    %p154 = scmp.ne.s32.totalorder %s149, %s151
    %p155 = scmp.eq.s32.totalorder %s12, 0
    %p156 = por %p154, %p155
    %p157 = scmp.ne.s32.totalorder %s149, %s151
    %p158 = scmp.eq.s32.totalorder %s17, 1
    %p159 = por %p157, %p158
    %p160 = scmp.ne.s32.totalorder %s151, %s152
    %p161 = scmp.eq.s32.totalorder %s17, 0
    %p162 = por %p160, %p161
    %p163 = scmp.ne.s32.totalorder %s151, %s152
    %p164 = scmp.eq.s32.totalorder %s18, 1
    %p165 = por %p163, %p164
    %p167 = scmp.ne.s32.totalorder %s152, %s166
    %p168 = scmp.eq.s32.totalorder %s18, 0
    %p169 = por %p167, %p168
    %s170 = ssub.s32 %s19, %s31
    %s171 = ssub.s32 %s20, %s27
    %s172 = sor.u32 %s170, %s171
    %p173 = scmp.eq.s32.totalorder %s172, 0
    %s175 = sadd.s32 %s174, 1
    %s176 = scalar_select %p173, %s174, %s175
    %p179 = pneg %p173
    %p180 = scmp.eq.s32.totalorder %s12, 1
    %p181 = por %p179, %p180
    %p182 = scmp.ne.s32.totalorder %s174, %s177
    %p183 = scmp.eq.s32.totalorder %s12, 0
    %p184 = por %p182, %p183
    %p185 = scmp.ne.s32.totalorder %s174, %s177
    %p186 = scmp.eq.s32.totalorder %s17, 1
    %p187 = por %p185, %p186
    %p188 = scmp.ne.s32.totalorder %s177, %s178
    %p189 = scmp.eq.s32.totalorder %s17, 0
    %p190 = por %p188, %p189
    %p191 = scmp.ne.s32.totalorder %s177, %s178
    %p192 = scmp.eq.s32.totalorder %s18, 1
    %p193 = por %p191, %p192
    %p195 = scmp.ne.s32.totalorder %s178, %s194
    %p196 = scmp.eq.s32.totalorder %s18, 0
    %p197 = por %p195, %p196
    %p198 = scmp.le.s32.totalorder 1, %s12
    %p199 = scmp.lt.s32.totalorder %s12, 3
    %p200 = pnand %p198, %p199
    %p201 = pneg %p200
    // Predicated region
    $region9: #{tpu_custom_call.1} parent=5 // pred_check
      _
    $region10: #{tpu_custom_call.1} parent=5 // pred_check_branch
      %203 = sbr.rel (%p200) target = $region12
    $region11: #{tpu_custom_call.1} parent=5 // pred_region
      %s204 = ssub.s32 %s12, 1
      // Predicated region
      $region13: #{tpu_custom_call.1} parent=11 // pred_check
        %p205 = pneg %p99
      $region14: #{tpu_custom_call.1} parent=11 // pred_check_branch
        %207 = sbr.rel (%p205) target = $region16
      $region15: #{tpu_custom_call.1} parent=11 // pred_region
        _
      $region16: #{tpu_custom_call.1} parent=11 // pred_fallthru
        _
      // Predicated region
      $region17: #{tpu_custom_call.1} parent=11 // pred_check
        %p208 = pneg %p120
      $region18: #{tpu_custom_call.1} parent=11 // pred_check_branch
        %210 = sbr.rel (%p208) target = $region20
      $region19: #{tpu_custom_call.1} parent=11 // pred_region
        _
      $region20: #{tpu_custom_call.1} parent=11 // pred_fallthru
        _
      // Predicated region
      $region21: #{tpu_custom_call.1} parent=11 // pred_check
        %p211 = pneg %p141
      $region22: #{tpu_custom_call.1} parent=11 // pred_check_branch
        %213 = sbr.rel (%p211) target = $region24
      $region23: #{tpu_custom_call.1} parent=11 // pred_region
        _
      $region24: #{tpu_custom_call.1} parent=11 // pred_fallthru
        _
      // Predicated region
      $region25: #{tpu_custom_call.1} parent=11 // pred_check
        %p214 = pneg %p162
      $region26: #{tpu_custom_call.1} parent=11 // pred_check_branch
        %216 = sbr.rel (%p214) target = $region28
      $region27: #{tpu_custom_call.1} parent=11 // pred_region
        _
      $region28: #{tpu_custom_call.1} parent=11 // pred_fallthru
        _
    $region12: #{tpu_custom_call.1} parent=5 // pred_fallthru
      _
    %p217 = scmp.lt.s32.totalorder %s12, 2
    // Predicated region
    $region29: #{tpu_custom_call.1} parent=5 // pred_check
      %p218 = pneg %p217
    $region30: #{tpu_custom_call.1} parent=5 // pred_check_branch
      %220 = sbr.rel (%p218) target = $region32
    $region31: #{tpu_custom_call.1} parent=5 // pred_region
      // Predicated region
      $region33: #{tpu_custom_call.1} parent=31 // pred_check
        %p221 = pneg %p46
      $region34: #{tpu_custom_call.1} parent=31 // pred_check_branch
        %223 = sbr.rel (%p221) target = $region36
      $region35: #{tpu_custom_call.1} parent=31 // pred_region
        %p224 = scmp.lt.s32.totalorder %s19, 1
        %s225 = scalar_select %p224, %s19, 1
        %p226 = scmp.lt.s32.totalorder %s20, 0
        %s227 = scalar_select %p226, %s20, 0
        %s228 = sadd.s32 %s227, %s225
        %s229 = smul.addr %s228, 4
        %s230 = scalar_lea.vmem %s0, %s229
      $region36: #{tpu_custom_call.1} parent=31 // pred_fallthru
        _
      // Predicated region
      $region37: #{tpu_custom_call.1} parent=31 // pred_check
        %p231 = pneg %p72
      $region38: #{tpu_custom_call.1} parent=31 // pred_check_branch
        %233 = sbr.rel (%p231) target = $region40
      $region39: #{tpu_custom_call.1} parent=31 // pred_region
        %p234 = scmp.lt.s32.totalorder %s19, 1
        %s235 = scalar_select %p234, %s19, 1
        %s236 = smul.addr %s235, 2
        %s237 = smul.addr %s236, 4
        %s238 = scalar_lea.vmem %s1, %s237
      $region40: #{tpu_custom_call.1} parent=31 // pred_fallthru
        _
    $region32: #{tpu_custom_call.1} parent=5 // pred_fallthru
      _
    %p239 = scmp.le.s32.totalorder 1, %s12
    %p240 = scmp.lt.s32.totalorder %s12, 3
    %p241 = pnand %p239, %p240
    %p242 = pneg %p241
    // Predicated region
    $region41: #{tpu_custom_call.1} parent=5 // pred_check
      _
    $region42: #{tpu_custom_call.1} parent=5 // pred_check_branch
      %244 = sbr.rel (%p241) target = $region44
    $region43: #{tpu_custom_call.1} parent=5 // pred_region
      %s245 = ssub.s32 %s12, 1
      %p246 = scmp.lt.s32.totalorder %s21, 1
      %s247 = scalar_select %p246, %s21, 1
      %p248 = scmp.lt.s32.totalorder %s22, 0
      %s249 = scalar_select %p248, %s22, 0
      %s250 = sadd.s32 %s249, %s247
      %s251 = smul.addr %s250, 4
      %s252 = scalar_lea.vmem %s0, %s251
      %p253 = pneg %p52
      %p254 = pneg %p49
      %p255 = scmp.lt.s32.totalorder %s21, 1
      %s256 = scalar_select %p255, %s21, 1
      %s257 = smul.addr %s256, 2
      %s258 = smul.addr %s257, 4
      %s259 = scalar_lea.vmem %s1, %s258
      %p260 = pneg %p78
      %p261 = pneg %p75
      %p262 = pneg %p99
      %p263 = pneg %p96
      %p264 = pneg %p120
      %p265 = pneg %p117
      %p266 = pneg %p141
      %p267 = pneg %p138
      %p268 = pneg %p162
      %p269 = pneg %p159
      %p270 = pneg %p190
      %p271 = pneg %p187
      %p272 = scmp.lt.s32.totalorder %s21, 1
      %s273 = scalar_select %p272, %s21, 1
      %p274 = scmp.lt.s32.totalorder %s22, 0
      %s275 = scalar_select %p274, %s22, 0
      %s276 = smul.addr %s273, 4
      %s277 = sadd.s32 %s275, %s276
      %s278 = smul.addr %s277, 8
      %s279 = scalar_lea.vmem %s6, %s278
      %p280 = scmp.lt.s32.totalorder %s21, 1
      %s281 = scalar_select %p280, %s21, 1
      %p282 = scmp.lt.s32.totalorder %s22, 0
      %s283 = scalar_select %p282, %s22, 0
      %s284 = sadd.s32 %s283, %s281
      %s285 = smul.addr %s284, 4
      %s286 = scalar_lea.vmem %s0, %s285
      %p287 = scmp.lt.s32.totalorder %s21, 1
      %s288 = scalar_select %p287, %s21, 1
      %s289 = smul.addr %s288, 2
      %s290 = smul.addr %s289, 4
      %s291 = scalar_lea.vmem %s1, %s290
      %p292 = scmp.lt.s32.totalorder %s21, 1
      %s293 = scalar_select %p292, %s21, 1
      %p294 = scmp.lt.s32.totalorder %s22, 0
      %s295 = scalar_select %p294, %s22, 0
      %s296 = smul.addr %s293, 4
      %s297 = sadd.s32 %s295, %s296
      %s298 = smul.addr %s297, 8
      %s299 = scalar_lea.vmem %s6, %s298
      %v301 = vld [vmem:[%s286] sm:$0x7]
      %v302 = vld [vmem:[%s291] sm:$0xf]
      %v303 = vld [vmem:[%s291 + $0x4] sm:$0xf]
      %v304 = vld [vmem:[%s2] sm:$0xf]
      %v305 = vld [vmem:[%s2 + $0x4] sm:$0x3]
      %v306 = vld [vmem:[%s3] sm:$0x1]
      %v308 = vlaneseq
      %v309 = vshrl.u32 %v308, 7
      %v310 = vsub.s32 0, %v309
      %v311 = vrot.slane %v306, %v310
      %v315 = vunpack.c.l.b16 %v304
      %v316 = vunpack.c.l.b16 %v305
      %v317 = vpack.c.b16 %v316, %v315
      %vm318 = vcmask 97280
      %v320 = vsel %vm318, %v301, 0
      %vm322 = vcmask 1045504
      %v324 = vsel %vm322, %v317, 0
      %326 = vmatprep.subr.bf16.mxu0 0
      %327 = vmatpush1.bf16.msra.mxu0 0
      %328 = vmatprep.subr.bf16.mxu0 0
      %329 = vmatpush1.bf16.msra.mxu0 0
      %330 = vmatprep.subr.bf16.mxu0 0
      %331 = vmatpush1.bf16.msra.mxu0 0
      %332 = vmatprep.subr.bf16.mxu0 0
      %333 = vmatpush1.bf16.msra.mxu0 0
      %334 = vmatprep.subr.bf16.mxu0 0
      %335 = vmatpush1.bf16.msra.mxu0 0
      %336 = vmatprep.subr.bf16.mxu0 0
      %337 = vmatpush1.bf16.msra.mxu0 0
      %338 = vmatprep.subr.bf16.mxu0 0
      %339 = vmatpush1.bf16.msra.mxu0 0
      %340 = vmatprep.subr.bf16.mxu0 0
      %341 = vmatpush1.bf16.msra.mxu0 %v324
      %342 = vmatprep.subr.bf16.mxu0 0
      %343 = vmatpush2.bf16.msra.mxu0 0
      %344 = vmatprep.subr.bf16.mxu0 0
      %345 = vmatpush2.bf16.msra.mxu0 0
      %346 = vmatprep.subr.bf16.mxu0 0
      %347 = vmatpush2.bf16.msra.mxu0 0
      %348 = vmatprep.subr.bf16.mxu0 0
      %349 = vmatpush2.bf16.msra.mxu0 0
      %350 = vmatprep.subr.bf16.mxu0 0
      %351 = vmatpush2.bf16.msra.mxu0 0
      %352 = vmatprep.subr.bf16.mxu0 0
      %353 = vmatpush2.bf16.msra.mxu0 0
      %354 = vmatprep.subr.bf16.mxu0 0
      %355 = vmatpush2.bf16.msra.mxu0 0
      %356 = vmatprep.subr.bf16.mxu0 0
      %357 = vmatpush2.bf16.msra.mxu0 0
      %358 = vmatprep.mubr.bf16.mxu0 0
      %359 = vmatmul.mubr.bf16.gmra.mxu0 %v320
      %v360 = vpop.f32.mrf.mxu0
      %v361 = vadd.f32 %v311, %v360
      %v362 = vpop.f32.mrf.mxu0
      %v363 = vpop.f32.mrf.mxu0
      %v364 = vpop.f32.mrf.mxu0
      %365 = vdwg.mxu0
      %v366 = vld [vmem:[%s4] sm:$0xf]
      %v367 = vld [vmem:[%s4 + $0x4] sm:$0x3]
      %v368 = vld [vmem:[%s5] sm:$0x1]
      %v370 = vlaneseq
      %v371 = vshrl.u32 %v370, 7
      %v372 = vsub.s32 0, %v371
      %v373 = vrot.slane %v368, %v372
      %v377 = vunpack.c.l.b16 %v366
      %v378 = vunpack.c.l.b16 %v367
      %v379 = vpack.c.b16 %v378, %v377
      %v381 = vsel %vm322, %v379, 0
      %383 = vmatprep.subr.bf16.mxu0 0
      %384 = vmatpush1.bf16.msra.mxu0 0
      %385 = vmatprep.subr.bf16.mxu0 0
      %386 = vmatpush1.bf16.msra.mxu0 0
      %387 = vmatprep.subr.bf16.mxu0 0
      %388 = vmatpush1.bf16.msra.mxu0 0
      %389 = vmatprep.subr.bf16.mxu0 0
      %390 = vmatpush1.bf16.msra.mxu0 0
      %391 = vmatprep.subr.bf16.mxu0 0
      %392 = vmatpush1.bf16.msra.mxu0 0
      %393 = vmatprep.subr.bf16.mxu0 0
      %394 = vmatpush1.bf16.msra.mxu0 0
      %395 = vmatprep.subr.bf16.mxu0 0
      %396 = vmatpush1.bf16.msra.mxu0 0
      %397 = vmatprep.subr.bf16.mxu0 0
      %398 = vmatpush1.bf16.msra.mxu0 %v381
      %399 = vmatprep.subr.bf16.mxu0 0
      %400 = vmatpush2.bf16.msra.mxu0 0
      %401 = vmatprep.subr.bf16.mxu0 0
      %402 = vmatpush2.bf16.msra.mxu0 0
      %403 = vmatprep.subr.bf16.mxu0 0
      %404 = vmatpush2.bf16.msra.mxu0 0
      %405 = vmatprep.subr.bf16.mxu0 0
      %406 = vmatpush2.bf16.msra.mxu0 0
      %407 = vmatprep.subr.bf16.mxu0 0
      %408 = vmatpush2.bf16.msra.mxu0 0
      %409 = vmatprep.subr.bf16.mxu0 0
      %410 = vmatpush2.bf16.msra.mxu0 0
      %411 = vmatprep.subr.bf16.mxu0 0
      %412 = vmatpush2.bf16.msra.mxu0 0
      %413 = vmatprep.subr.bf16.mxu0 0
      %414 = vmatpush2.bf16.msra.mxu0 0
      %415 = vmatprep.mubr.bf16.mxu0 0
      %416 = vmatmul.mubr.bf16.gmra.mxu0 %v320
      %v417 = vpop.f32.mrf.mxu0
      %v418 = vadd.f32 %v373, %v417
      %v419 = vpop.f32.mrf.mxu0
      %v420 = vpop.f32.mrf.mxu0
      %v421 = vpop.f32.mrf.mxu0
      %422 = vdwg.mxu0
      %v423 = vpack.c.bf16 %v361, %v361
      %425 = vset.pattern.permute.xlu0 0
      %426 = vperm.xlu0 %425, %v418
      %v427 = vpop.permute.xlu0 %426
      %v431 = vunpack.c.l.b16 %v302
      %v432 = vunpack.c.l.b16 %v303
      %v433 = vpack.c.b16 %v432, %v431
      %vm435 = vcmask 130048
      %v437 = vsel %vm435, %v423, 0
      %439 = vmatprep.subr.bf16.mxu0 0
      %440 = vmatpush1.bf16.msra.mxu0 0
      %441 = vmatprep.subr.bf16.mxu0 0
      %442 = vmatpush1.bf16.msra.mxu0 0
      %443 = vmatprep.subr.bf16.mxu0 0
      %444 = vmatpush1.bf16.msra.mxu0 0
      %445 = vmatprep.subr.bf16.mxu0 0
      %446 = vmatpush1.bf16.msra.mxu0 0
      %447 = vmatprep.subr.bf16.mxu0 0
      %448 = vmatpush1.bf16.msra.mxu0 0
      %449 = vmatprep.subr.bf16.mxu0 0
      %450 = vmatpush1.bf16.msra.mxu0 0
      %451 = vmatprep.subr.bf16.mxu0 0
      %452 = vmatpush1.bf16.msra.mxu0 0
      %453 = vmatprep.subr.bf16.mxu0 0
      %454 = vmatpush1.bf16.msra.mxu0 %v433
      %455 = vmatprep.subr.bf16.mxu0 0
      %456 = vmatpush2.bf16.msra.mxu0 0
      %457 = vmatprep.subr.bf16.mxu0 0
      %458 = vmatpush2.bf16.msra.mxu0 0
      %459 = vmatprep.subr.bf16.mxu0 0
      %460 = vmatpush2.bf16.msra.mxu0 0
      %461 = vmatprep.subr.bf16.mxu0 0
      %462 = vmatpush2.bf16.msra.mxu0 0
      %463 = vmatprep.subr.bf16.mxu0 0
      %464 = vmatpush2.bf16.msra.mxu0 0
      %465 = vmatprep.subr.bf16.mxu0 0
      %466 = vmatpush2.bf16.msra.mxu0 0
      %467 = vmatprep.subr.bf16.mxu0 0
      %468 = vmatpush2.bf16.msra.mxu0 0
      %469 = vmatprep.subr.bf16.mxu0 0
      %470 = vmatpush2.bf16.msra.mxu0 0
      %471 = vmatprep.mubr.bf16.mxu0 0
      %472 = vmatmul.mubr.bf16.gmra.mxu0 %v437
      %v473 = vpop.f32.mrf.mxu0
      %v474 = vadd.f32 %v427, %v473
      %v475 = vpop.f32.mrf.mxu0
      %v476 = vpop.f32.mrf.mxu0
      %v477 = vpop.f32.mrf.mxu0
      %478 = vdwg.mxu0
      %vm479 = vcmask 62464
      %480 = vst.msk [vmem:[%s299] sm:$0x3f] %vm479, %v474
      %481 = vset.pattern.permute.xlu0 1
      %482 = vperm.xlu0 %481, %v418
      %v483 = vpop.permute.xlu0 %482
      %486 = vrot.lane.b32.xlu0 %v423, 112
      %v487 = vpop.permute.xlu0 %486
      %v489 = vsel %vm435, %v487, 0
      %491 = vmatprep.subr.bf16.mxu0 0
      %492 = vmatpush1.bf16.msra.mxu0 0
      %493 = vmatprep.subr.bf16.mxu0 0
      %494 = vmatpush1.bf16.msra.mxu0 0
      %495 = vmatprep.subr.bf16.mxu0 0
      %496 = vmatpush1.bf16.msra.mxu0 0
      %497 = vmatprep.subr.bf16.mxu0 0
      %498 = vmatpush1.bf16.msra.mxu0 0
      %499 = vmatprep.subr.bf16.mxu0 0
      %500 = vmatpush1.bf16.msra.mxu0 0
      %501 = vmatprep.subr.bf16.mxu0 0
      %502 = vmatpush1.bf16.msra.mxu0 0
      %503 = vmatprep.subr.bf16.mxu0 0
      %504 = vmatpush1.bf16.msra.mxu0 0
      %505 = vmatprep.subr.bf16.mxu0 0
      %506 = vmatpush1.bf16.msra.mxu0 %v433
      %507 = vmatprep.subr.bf16.mxu0 0
      %508 = vmatpush2.bf16.msra.mxu0 0
      %509 = vmatprep.subr.bf16.mxu0 0
      %510 = vmatpush2.bf16.msra.mxu0 0
      %511 = vmatprep.subr.bf16.mxu0 0
      %512 = vmatpush2.bf16.msra.mxu0 0
      %513 = vmatprep.subr.bf16.mxu0 0
      %514 = vmatpush2.bf16.msra.mxu0 0
      %515 = vmatprep.subr.bf16.mxu0 0
      %516 = vmatpush2.bf16.msra.mxu0 0
      %517 = vmatprep.subr.bf16.mxu0 0
      %518 = vmatpush2.bf16.msra.mxu0 0
      %519 = vmatprep.subr.bf16.mxu0 0
      %520 = vmatpush2.bf16.msra.mxu0 0
      %521 = vmatprep.subr.bf16.mxu0 0
      %522 = vmatpush2.bf16.msra.mxu0 0
      %523 = vmatprep.mubr.bf16.mxu0 0
      %524 = vmatmul.mubr.bf16.gmra.mxu0 %v489
      %v525 = vpop.f32.mrf.mxu0
      %v526 = vadd.f32 %v483, %v525
      %v527 = vpop.f32.mrf.mxu0
      %v528 = vpop.f32.mrf.mxu0
      %v529 = vpop.f32.mrf.mxu0
      %530 = vdwg.mxu0
      %s531 = scalar_lea.vmem %s299, 8
      %532 = vst.msk [vmem:[%s531] sm:$0x3f] %vm479, %v526
      %533 = vset.pattern.permute.xlu0 2
      %534 = vperm.xlu0 %533, %v418
      %v535 = vpop.permute.xlu0 %534
      %537 = vrot.lane.b32.xlu0 %v423, 96
      %v538 = vpop.permute.xlu0 %537
      %v540 = vsel %vm435, %v538, 0
      %542 = vmatprep.subr.bf16.mxu0 0
      %543 = vmatpush1.bf16.msra.mxu0 0
      %544 = vmatprep.subr.bf16.mxu0 0
      %545 = vmatpush1.bf16.msra.mxu0 0
      %546 = vmatprep.subr.bf16.mxu0 0
      %547 = vmatpush1.bf16.msra.mxu0 0
      %548 = vmatprep.subr.bf16.mxu0 0
      %549 = vmatpush1.bf16.msra.mxu0 0
      %550 = vmatprep.subr.bf16.mxu0 0
      %551 = vmatpush1.bf16.msra.mxu0 0
      %552 = vmatprep.subr.bf16.mxu0 0
      %553 = vmatpush1.bf16.msra.mxu0 0
      %554 = vmatprep.subr.bf16.mxu0 0
      %555 = vmatpush1.bf16.msra.mxu0 0
      %556 = vmatprep.subr.bf16.mxu0 0
      %557 = vmatpush1.bf16.msra.mxu0 %v433
      %558 = vmatprep.subr.bf16.mxu0 0
      %559 = vmatpush2.bf16.msra.mxu0 0
      %560 = vmatprep.subr.bf16.mxu0 0
      %561 = vmatpush2.bf16.msra.mxu0 0
      %562 = vmatprep.subr.bf16.mxu0 0
      %563 = vmatpush2.bf16.msra.mxu0 0
      %564 = vmatprep.subr.bf16.mxu0 0
      %565 = vmatpush2.bf16.msra.mxu0 0
      %566 = vmatprep.subr.bf16.mxu0 0
      %567 = vmatpush2.bf16.msra.mxu0 0
      %568 = vmatprep.subr.bf16.mxu0 0
      %569 = vmatpush2.bf16.msra.mxu0 0
      %570 = vmatprep.subr.bf16.mxu0 0
      %571 = vmatpush2.bf16.msra.mxu0 0
      %572 = vmatprep.subr.bf16.mxu0 0
      %573 = vmatpush2.bf16.msra.mxu0 0
      %574 = vmatprep.mubr.bf16.mxu0 0
      %575 = vmatmul.mubr.bf16.gmra.mxu0 %v540
      %v576 = vpop.f32.mrf.mxu0
      %v577 = vadd.f32 %v535, %v576
      %v578 = vpop.f32.mrf.mxu0
      %v579 = vpop.f32.mrf.mxu0
      %v580 = vpop.f32.mrf.mxu0
      %581 = vdwg.mxu0
      %s582 = scalar_lea.vmem %s299, 16
      %583 = vst.msk [vmem:[%s582] sm:$0x3f] %vm479, %v577
      %584 = vset.pattern.permute.xlu0 3
      %585 = vperm.xlu0 %584, %v418
      %v586 = vpop.permute.xlu0 %585
      %588 = vrot.lane.b32.xlu0 %v423, 80
      %v589 = vpop.permute.xlu0 %588
      %v591 = vsel %vm435, %v589, 0
      %593 = vmatprep.subr.bf16.mxu0 0
      %594 = vmatpush1.bf16.msra.mxu0 0
      %595 = vmatprep.subr.bf16.mxu0 0
      %596 = vmatpush1.bf16.msra.mxu0 0
      %597 = vmatprep.subr.bf16.mxu0 0
      %598 = vmatpush1.bf16.msra.mxu0 0
      %599 = vmatprep.subr.bf16.mxu0 0
      %600 = vmatpush1.bf16.msra.mxu0 0
      %601 = vmatprep.subr.bf16.mxu0 0
      %602 = vmatpush1.bf16.msra.mxu0 0
      %603 = vmatprep.subr.bf16.mxu0 0
      %604 = vmatpush1.bf16.msra.mxu0 0
      %605 = vmatprep.subr.bf16.mxu0 0
      %606 = vmatpush1.bf16.msra.mxu0 0
      %607 = vmatprep.subr.bf16.mxu0 0
      %608 = vmatpush1.bf16.msra.mxu0 %v433
      %609 = vmatprep.subr.bf16.mxu0 0
      %610 = vmatpush2.bf16.msra.mxu0 0
      %611 = vmatprep.subr.bf16.mxu0 0
      %612 = vmatpush2.bf16.msra.mxu0 0
      %613 = vmatprep.subr.bf16.mxu0 0
      %614 = vmatpush2.bf16.msra.mxu0 0
      %615 = vmatprep.subr.bf16.mxu0 0
      %616 = vmatpush2.bf16.msra.mxu0 0
      %617 = vmatprep.subr.bf16.mxu0 0
      %618 = vmatpush2.bf16.msra.mxu0 0
      %619 = vmatprep.subr.bf16.mxu0 0
      %620 = vmatpush2.bf16.msra.mxu0 0
      %621 = vmatprep.subr.bf16.mxu0 0
      %622 = vmatpush2.bf16.msra.mxu0 0
      %623 = vmatprep.subr.bf16.mxu0 0
      %624 = vmatpush2.bf16.msra.mxu0 0
      %625 = vmatprep.mubr.bf16.mxu0 0
      %626 = vmatmul.mubr.bf16.gmra.mxu0 %v591
      %v627 = vpop.f32.mrf.mxu0
      %v628 = vadd.f32 %v586, %v627
      %v629 = vpop.f32.mrf.mxu0
      %v630 = vpop.f32.mrf.mxu0
      %v631 = vpop.f32.mrf.mxu0
      %632 = vdwg.mxu0
      %s633 = scalar_lea.vmem %s299, 24
      %634 = vst.msk [vmem:[%s633] sm:$0x3f] %vm479, %v628
      %p635 = scmp.lt.s32.totalorder %s21, 1
      %s636 = scalar_select %p635, %s21, 1
      %p637 = scmp.lt.s32.totalorder %s22, 0
      %s638 = scalar_select %p637, %s22, 0
      %s639 = smul.addr %s636, 4
      %s640 = sadd.s32 %s638, %s639
      %s641 = smul.addr %s640, 8
      %s642 = scalar_lea.vmem %s6, %s641
      // Predicated region
      $region45: #{tpu_custom_call.1} parent=43 // pred_check
        %p643 = pneg %p187
      $region46: #{tpu_custom_call.1} parent=43 // pred_check_branch
        %645 = sbr.rel (%p643) target = $region48
      $region47: #{tpu_custom_call.1} parent=43 // pred_region
        _
      $region48: #{tpu_custom_call.1} parent=43 // pred_fallthru
        _
    $region44: #{tpu_custom_call.1} parent=5 // pred_fallthru
      _
    %p646 = scmp.le.s32.totalorder 2, %s12
    // Predicated region
    $region49: #{tpu_custom_call.1} parent=5 // pred_check
      %p647 = pneg %p646
    $region50: #{tpu_custom_call.1} parent=5 // pred_check_branch
      %649 = sbr.rel (%p647) target = $region52
    $region51: #{tpu_custom_call.1} parent=5 // pred_region
      %s650 = ssub.s32 %s12, 2
      // Predicated region
      $region53: #{tpu_custom_call.1} parent=51 // pred_check
        %p651 = pneg %p193
      $region54: #{tpu_custom_call.1} parent=51 // pred_check_branch
        %653 = sbr.rel (%p651) target = $region56
      $region55: #{tpu_custom_call.1} parent=51 // pred_region
        %p654 = scmp.lt.s32.totalorder %s23, 1
        %s655 = scalar_select %p654, %s23, 1
        %p656 = scmp.lt.s32.totalorder %s24, 0
        %s657 = scalar_select %p656, %s24, 0
        %s658 = smul.addr %s655, 4
        %s659 = sadd.s32 %s657, %s658
        %s660 = smul.addr %s659, 8
        %s661 = scalar_lea.vmem %s6, %s660
      $region56: #{tpu_custom_call.1} parent=51 // pred_fallthru
        _
    $region52: #{tpu_custom_call.1} parent=5 // pred_fallthru
      _
  $region6: #{tpu_custom_call.1} parent=0 // loop_footer
    %s16 = sadd.s32 1, %s12
  $region7: #{tpu_custom_call.1} parent=0 // loop_footer_branch
    %11 = sbr.rel target = $region3
  $region8: #{tpu_custom_call.1} parent=0 // loop_exit
    _

</llo_original>
